<compile_context>
chip_gen: v6e
topology: v6e:2x2x1
jax: 0.10.0
libtpu: 0.0.40
codegen_flags: <defaults>
</compile_context>

<pallas_src>
import jax
import jax.numpy as jnp
from jax.experimental import pallas as pl
from jax.experimental.pallas import tpu as pltpu

_CHUNK_THRESHOLD_BYTES = 8 << 20   # only bother chunking above 8 MiB
_MAX_CHUNKS = 4                    # a few concurrent DMAs is enough to saturate HBM


def _chunk_bounds(leading: int, num_chunks: int):
    """Evenly split [0, leading) into `num_chunks` contiguous non-empty ranges."""
    return tuple(
        ((c * leading) // num_chunks, ((c + 1) * leading) // num_chunks)
        for c in range(num_chunks)
    )


def _make_identity_kernel(chunk_bounds):
    """Pure-DMA copy: one async HBM->HBM copy per (static) leading-axis chunk."""

    def kernel(x_hbm, o_hbm, sem):
        copies = [
            pltpu.make_async_copy(x_hbm.at[s:e], o_hbm.at[s:e], sem.at[c])
            for c, (s, e) in enumerate(chunk_bounds)
        ]
        # Put every chunk DMA in flight before waiting on any of them.
        for cp in copies:
            cp.start()
        for cp in copies:
            cp.wait()

    return kernel


def identity(x: jax.Array) -> jax.Array:
    """Pallas identity: returns an array equal to x (same shape & dtype)."""
    # Degenerate cases: nothing to DMA.  `return x` is the true Identity.
    if x.size == 0 or x.ndim == 0:
        return x

    leading = x.shape[0]
    total_bytes = x.size * jnp.dtype(x.dtype).itemsize
    if leading >= 2 and total_bytes >= _CHUNK_THRESHOLD_BYTES:
        num_chunks = min(leading, _MAX_CHUNKS)
    else:
        num_chunks = 1
    bounds = _chunk_bounds(leading, num_chunks)

    return pl.pallas_call(
        _make_identity_kernel(bounds),
        out_shape=jax.ShapeDtypeStruct(x.shape, x.dtype),
        # Raw HBM refs on both sides: the kernel is pure DMA, no VMEM staging,
        # no (8,128) tile constraints, no padding.
        in_specs=[pl.BlockSpec(memory_space=pl.ANY)],
        out_specs=pl.BlockSpec(memory_space=pl.ANY),
        scratch_shapes=[pltpu.SemaphoreType.DMA((num_chunks,))],
    )(x)


if __name__ == "__main__":
    key = jax.random.PRNGKey(0)
    # Small NCHW-shaped input, consistent with a typical conv-net tensor.
    x = jax.random.normal(key, (2, 4, 16, 16), dtype=jnp.float32)

    y = identity(x)
    jax.block_until_ready(y)

    assert y.shape == x.shape
    assert y.dtype == x.dtype
    assert bool(jnp.all(y == x))

    print("KERNEL_OK")
</pallas_src>

<mosaic_0001>
module attributes {stable_mosaic.version = 11 : i64} {
  func.func @kernel(%arg0: memref<2x4x16x16xf32, #tpu.memory_space<any>>, %arg1: memref<2x4x16x16xf32, #tpu.memory_space<any>>, %arg2: memref<1x!tpu.dma_semaphore, #tpu.memory_space<semaphore_mem>>) attributes {dimension_semantics = [], scalar_prefetch = 0 : i64, scratch_operands = 1 : i64, tpu.core_type = #tpu.core_type<tc>} {
    %c0_i32 = arith.constant 0 : i32
    %c0_i32_0 = arith.constant 0 : i32
    %c0_i32_1 = arith.constant 0 : i32
    %c0_i32_2 = arith.constant 0 : i32
    %c0_i32_3 = arith.constant 0 : i32
    %0 = tpu.memref_slice %arg0[%c0_i32_0, %c0_i32_1, %c0_i32_2, %c0_i32_3] : memref<2x4x16x16xf32, #tpu.memory_space<any>> -> memref<2x4x16x16xf32, #tpu.memory_space<any>>
    %c0_i32_4 = arith.constant 0 : i32
    %c0_i32_5 = arith.constant 0 : i32
    %c0_i32_6 = arith.constant 0 : i32
    %c0_i32_7 = arith.constant 0 : i32
    %1 = tpu.memref_slice %arg1[%c0_i32_4, %c0_i32_5, %c0_i32_6, %c0_i32_7] : memref<2x4x16x16xf32, #tpu.memory_space<any>> -> memref<2x4x16x16xf32, #tpu.memory_space<any>>
    %2 = tpu.memref_slice %arg2[%c0_i32] : memref<1x!tpu.dma_semaphore, #tpu.memory_space<semaphore_mem>> -> memref<1x!tpu.dma_semaphore, #tpu.memory_space<semaphore_mem>>
    %3 = tpu.memref_squeeze %2 : memref<1x!tpu.dma_semaphore, #tpu.memory_space<semaphore_mem>> -> memref<!tpu.dma_semaphore, #tpu.memory_space<semaphore_mem>>
    tpu.enqueue_dma source(%0 : memref<2x4x16x16xf32, #tpu.memory_space<any>>) target(%1 : memref<2x4x16x16xf32, #tpu.memory_space<any>>) target_semaphore(%3 : memref<!tpu.dma_semaphore, #tpu.memory_space<semaphore_mem>>)
    %c0_i32_8 = arith.constant 0 : i32
    %c0_i32_9 = arith.constant 0 : i32
    %c0_i32_10 = arith.constant 0 : i32
    %c0_i32_11 = arith.constant 0 : i32
    %c0_i32_12 = arith.constant 0 : i32
    %4 = tpu.memref_slice %arg0[%c0_i32_9, %c0_i32_10, %c0_i32_11, %c0_i32_12] : memref<2x4x16x16xf32, #tpu.memory_space<any>> -> memref<2x4x16x16xf32, #tpu.memory_space<any>>
    %c0_i32_13 = arith.constant 0 : i32
    %c0_i32_14 = arith.constant 0 : i32
    %c0_i32_15 = arith.constant 0 : i32
    %c0_i32_16 = arith.constant 0 : i32
    %5 = tpu.memref_slice %arg1[%c0_i32_13, %c0_i32_14, %c0_i32_15, %c0_i32_16] : memref<2x4x16x16xf32, #tpu.memory_space<any>> -> memref<2x4x16x16xf32, #tpu.memory_space<any>>
    %6 = tpu.memref_slice %arg2[%c0_i32_8] : memref<1x!tpu.dma_semaphore, #tpu.memory_space<semaphore_mem>> -> memref<1x!tpu.dma_semaphore, #tpu.memory_space<semaphore_mem>>
    %7 = tpu.memref_squeeze %6 : memref<1x!tpu.dma_semaphore, #tpu.memory_space<semaphore_mem>> -> memref<!tpu.dma_semaphore, #tpu.memory_space<semaphore_mem>>
    tpu.wait_dma2 semaphore(%7 : memref<!tpu.dma_semaphore, #tpu.memory_space<semaphore_mem>>) src(%4 : memref<2x4x16x16xf32, #tpu.memory_space<any>>) dst(%5 : memref<2x4x16x16xf32, #tpu.memory_space<any>>)
    return
  }
}

</mosaic_0001>

<llo_original>
// kernel: tpu_custom_call.1
$region0: #{tpu_custom_call.1}
  #allocation0 [shape = 'u32[]', space=smem, size = 0x4, offset = 0x4, fixed_abs, tag = 'smem constant byte address 0x4 - core index']
  #allocation1 [shape = 'u32[144,128]{1,0:T(1,128)}', space=vmem, size = 0x12000, scoped, tag = 'internal scratch']
  #allocation2 [shape = 's32[1]{0}', space=sflag, size = 0x4, scoped, tag = 'scratch operand']
  #allocation3 [shape = 's32[]', space=sflag, size = 0x4, offset = 0, fixed_abs, tag = 'sflag constant byte address 0x0 - dummy sync flag']
  #allocation4 [shape = 'u32[0]{0}', space=smem, size = 0, offset = 0, fixed_abs, tag = 'smem constant byte address 0x0 - null']
  %s0 = inlined_call_operand.hbm [shape: f32[2,4,16,16], index: 0, kind: input, shape index: {}]
  %s1 = inlined_call_operand.hbm [shape: f32[2,4,16,16], index: 1, kind: output, shape index: {}]
  %s2 = sld [smem:[#allocation0]]
  $region2: #{tpu_custom_call.1} parent=0
    _
  %s4 = ssub.s32 1, %s2
  %s5 = scalar_select 0, %s4, %s2
  %s7 = sshll.u32 1, 14
  %s8 = sxor.u32 4294967295, %s7
  %12 = dma.general %s0, 2048, %s1, [#allocation2], 131072, [#allocation4], 0, 0
  %s13 = smul.u32 2, 4
  %s14 = smul.u32 %s13, 16
  %s15 = smul.u32 %s14, 1
  %s16 = sshll.u32 %s15, 4
  %17 = dma.done [#allocation2], %s16
  %18 = vsyncmov [#allocation2]
  %s19 = vpop.sfrf %18
  %p20 = scmp.eq.s32.totalorder %s19, 0
  %p21 = pneg %p20
  %23 = shalt.err (%p21)

</llo_original>
